<compile_context>
chip_gen: v5e
topology: v5e:2x2
jax: 0.10.0
libtpu: 0.0.40
codegen_flags: <defaults>
</compile_context>

<pallas_src>
import functools

import jax
import jax.numpy as jnp
from jax.experimental import pallas as pl
from jax.experimental.pallas import tpu as pltpu


def _tv_partials_kernel(x_ref, part_ref, *, b, tb, ragged):
    # x_ref: (tb, H, W) block in VMEM (input dtype).
    # part_ref: (1, 2, 128) f32 lane-dense partial-sum tile.
    x = x_ref[...]

    if ragged:
        # The last block may run past B; Pallas leaves that region of the VMEM
        # block unspecified, so zero those images (zero images contribute 0 to
        # both diff sums, and diffs never cross the image axis).
        start = pl.program_id(0) * tb
        img = start + jax.lax.broadcasted_iota(jnp.int32, x.shape, 0)
        x = jnp.where(img < b, x, jnp.zeros_like(x))

    # |diffs| in the input dtype; accumulate in f32.
    h_sum = jnp.sum(jnp.abs(x[:, 1:, :] - x[:, :-1, :]), dtype=jnp.float32)
    w_sum = jnp.sum(jnp.abs(x[:, :, 1:] - x[:, :, :-1]), dtype=jnp.float32)

    # Single full-block store: sublane 0 carries the h-sum, sublane 1 the w-sum.
    part_ref[...] = jnp.concatenate(
        [jnp.full((1, 1, 128), h_sum, dtype=jnp.float32),
         jnp.full((1, 1, 128), w_sum, dtype=jnp.float32)],
        axis=1,
    )


def _vmem_capacity_bytes() -> int:
    """Physical VMEM per TensorCore; conservative fallback if unavailable."""
    try:
        info = pltpu.get_tpu_info()
        cap = getattr(info, "vmem_capacity_bytes", None)
        if cap:
            return int(cap)
    except Exception:
        pass
    return 64 * 1024 * 1024  # v7x per-TC size; safe lower bound everywhere.


def _choose_tb(b: int, img_vmem_bytes: int, target_bytes: int):
    """Pick the batch tile: byte budget + >=min(b,4) grid steps, divisor preferred."""
    tb_bytes = max(1, target_bytes // max(1, img_vmem_bytes))
    tb_par = max(1, b // min(b, 4))          # guarantees >= min(b, 4) grid steps
    tb = max(1, min(b, tb_bytes, tb_par))
    # Prefer a divisor of b close to tb so there is no ragged tail (no mask op).
    for cand in range(tb, max(0, tb // 2), -1):
        if b % cand == 0:
            return cand, False
    return tb, True


def total_variation_loss(x: jax.Array, weight: float = 1e-6) -> jax.Array:
    """weight * (mean|dh| + mean|dw|), matching the PyTorch module."""
    n, c, h, w = x.shape
    b = n * c
    x3 = x.reshape(b, h, w)
    itemsize = jnp.dtype(x.dtype).itemsize

    # Padded VMEM footprint of one image inside a block (lanes -> 128, sublanes -> 8).
    w_pad = -(-w // 128) * 128
    h_pad = -(-h // 8) * 8
    img_vmem_bytes = h_pad * w_pad * itemsize

    vmem_cap = _vmem_capacity_bytes()
    target_bytes = max(2 << 20, min(16 << 20, vmem_cap // 16))
    tb, ragged = _choose_tb(b, img_vmem_bytes, target_bytes)
    nb = -(-b // tb)  # ceil-div

    block_bytes = tb * img_vmem_bytes
    # 2x block (double-buffered input) + ~2x block (diff temporaries) + headroom,
    # capped well under physical VMEM.
    vmem_limit = int(min(vmem_cap * 3 // 4,
                         max(32 << 20, 5 * block_bytes + (4 << 20))))

    kernel = functools.partial(_tv_partials_kernel, b=b, tb=tb, ragged=ragged)

    partials = pl.pallas_call(
        kernel,
        out_shape=jax.ShapeDtypeStruct((nb, 2, 128), jnp.float32),
        grid_spec=pltpu.PrefetchScalarGridSpec(
            num_scalar_prefetch=0,
            grid=(nb,),
            in_specs=[pl.BlockSpec((tb, h, w), lambda i: (i, 0, 0))],
            out_specs=pl.BlockSpec((1, 2, 128), lambda i: (i, 0, 0)),
        ),
        compiler_params=pltpu.CompilerParams(
            dimension_semantics=("parallel",),
            vmem_limit_bytes=vmem_limit,
        ),
        cost_estimate=pl.CostEstimate(
            flops=4 * b * h * w,
            transcendentals=0,
            bytes_accessed=b * h * w * itemsize + nb * 2 * 128 * 4,
        ),
    )(x3)

    # Divide by the TRUE element counts (no padded images exist anymore).
    h_count = b * (h - 1) * w
    w_count = b * h * (w - 1)
    h_tv = jnp.sum(partials[:, 0, 0]) / jnp.float32(h_count)
    w_tv = jnp.sum(partials[:, 1, 0]) / jnp.float32(w_count)
    # Always return a float32 scalar loss (PyTorch-style), even for bf16 inputs.
    return (jnp.float32(weight) * (h_tv + w_tv)).astype(jnp.float32)


def _reference(x, weight=1e-6):
    h_tv = jnp.mean(jnp.abs(x[:, :, 1:, :] - x[:, :, :-1, :]))
    w_tv = jnp.mean(jnp.abs(x[:, :, :, 1:] - x[:, :, :, :-1]))
    return weight * (h_tv + w_tv)


if __name__ == "__main__":
    key = jax.random.PRNGKey(0)
    x = jax.random.normal(key, (2, 4, 16, 16), dtype=jnp.float32)

    out = jax.jit(total_variation_loss)(x)
    out = jax.block_until_ready(out)

    ref = _reference(x)
    assert jnp.allclose(out, ref, rtol=1e-5, atol=1e-8), (out, ref)
    print("KERNEL_OK")
</pallas_src>

<mosaic_0001>
module attributes {stable_mosaic.version = 11 : i64} {
  func.func @_tv_partials_kernel(%arg0: i32, %arg1: memref<2x16x16xf32, #tpu.memory_space<vmem>>, %arg2: memref<1x2x128xf32, #tpu.memory_space<vmem>>) attributes {dimension_semantics = [#tpu.dimension_semantics<parallel>], iteration_bounds = array<i64: 4>, scalar_prefetch = 0 : i64, scratch_operands = 0 : i64, tpu.core_type = #tpu.core_type<tc>, window_params = [{transform_indices = @transform_0, window_bounds = array<i64: 2, 16, 16>}, {transform_indices = @transform_1, window_bounds = array<i64: 1, 2, 128>}]} {
    %c0 = arith.constant 0 : index
    %c0_0 = arith.constant 0 : index
    %c0_1 = arith.constant 0 : index
    %0 = vector.load %arg1[%c0, %c0_0, %c0_1] : memref<2x16x16xf32, #tpu.memory_space<vmem>>, vector<2x16x16xf32>
    %1 = vector.extract_strided_slice %0 {offsets = [0, 1, 0], sizes = [2, 15, 16], strides = [1, 1, 1]} : vector<2x16x16xf32> to vector<2x15x16xf32>
    %2 = vector.extract_strided_slice %0 {offsets = [0, 0, 0], sizes = [2, 15, 16], strides = [1, 1, 1]} : vector<2x16x16xf32> to vector<2x15x16xf32>
    %3 = arith.subf %1, %2 : vector<2x15x16xf32>
    %4 = math.absf %3 : vector<2x15x16xf32>
    %5 = vector.shape_cast %4 : vector<2x15x16xf32> to vector<1x2x15x16xf32>
    %cst = arith.constant dense<0.000000e+00> : vector<1xf32>
    %6 = vector.multi_reduction <add>, %5, %cst [1, 2, 3] : vector<1x2x15x16xf32> to vector<1xf32>
    %7 = vector.shape_cast %6 : vector<1xf32> to vector<1x1x1x1xf32>
    %8 = vector.extract %7[0, 0, 0, 0] : f32 from vector<1x1x1x1xf32>
    %9 = vector.extract_strided_slice %0 {offsets = [0, 0, 1], sizes = [2, 16, 15], strides = [1, 1, 1]} : vector<2x16x16xf32> to vector<2x16x15xf32>
    %10 = vector.extract_strided_slice %0 {offsets = [0, 0, 0], sizes = [2, 16, 15], strides = [1, 1, 1]} : vector<2x16x16xf32> to vector<2x16x15xf32>
    %11 = arith.subf %9, %10 : vector<2x16x15xf32>
    %12 = math.absf %11 : vector<2x16x15xf32>
    %13 = vector.shape_cast %12 : vector<2x16x15xf32> to vector<1x2x16x15xf32>
    %cst_2 = arith.constant dense<0.000000e+00> : vector<1xf32>
    %14 = vector.multi_reduction <add>, %13, %cst_2 [1, 2, 3] : vector<1x2x16x15xf32> to vector<1xf32>
    %15 = vector.shape_cast %14 : vector<1xf32> to vector<1x1x1x1xf32>
    %16 = vector.extract %15[0, 0, 0, 0] : f32 from vector<1x1x1x1xf32>
    %17 = vector.broadcast %8 : f32 to vector<1x1x128xf32>
    %18 = vector.broadcast %16 : f32 to vector<1x1x128xf32>
    %19 = tpu.concatenate %17, %18 in 1 : vector<1x1x128xf32>, vector<1x1x128xf32> -> vector<1x2x128xf32>
    %c0_3 = arith.constant 0 : index
    %c0_4 = arith.constant 0 : index
    %c0_5 = arith.constant 0 : index
    %20 = vector.load %arg2[%c0_3, %c0_4, %c0_5] : memref<1x2x128xf32, #tpu.memory_space<vmem>>, vector<1x2x128xf32>
    tpu.vector_store %arg2[%c0_3, %c0_4, %c0_5], %19 {strides = array<i32>} : memref<1x2x128xf32, #tpu.memory_space<vmem>>, vector<1x2x128xf32>,
    return
  }
  func.func @transform_0(%arg0: i32) -> (i32, i32, i32) {
    %c0_i32 = arith.constant 0 : i32
    %c0_i32_0 = arith.constant 0 : i32
    %c0_i32_1 = arith.constant 0 : i32
    return %arg0, %c0_i32, %c0_i32_0 : i32, i32, i32
  }
  func.func @transform_1(%arg0: i32) -> (i32, i32, i32) {
    %c0_i32 = arith.constant 0 : i32
    %c0_i32_0 = arith.constant 0 : i32
    %c0_i32_1 = arith.constant 0 : i32
    return %arg0, %c0_i32, %c0_i32_0 : i32, i32, i32
  }
}

</mosaic_0001>

<llo_original>
// kernel: total_variation_loss.1
$region0: #{total_variation_loss.1}
  #allocation0 [shape = 'u32[]', space=smem, size = 0x4, offset = 0x4, fixed_abs, tag = 'smem constant byte address 0x4 - core index']
  #allocation1 [shape = 'u32[72,128]{1,0:T(1,128)}', space=vmem, size = 0x9000, scoped, tag = 'internal scratch']
  %s0 = inlined_call_operand.hbm [shape: f32[8,16,16], index: 0, kind: input, shape index: {}]
  %s1 = inlined_call_operand.vmem [shape: f32[4,2,128], index: 1, kind: output, shape index: {}]
  %s2 = sld [smem:[#allocation0]]
  $region41: #{total_variation_loss.1} parent=0
    _
  %s4 = ssub.s32 1, %s2
  %s5 = scalar_select 0, %s4, %s2
  $region1: #{total_variation_loss.1} parent=0
    #allocation2 [shape = 'u8[32768]{0}', space=vmem, size = 0x8000, scoped, tag = 'input window, operand 0']
    #allocation3 [shape = 's32[2]{0}', space=sflag, size = 0x8, scoped, tag = 'scoped memory for total_variation_loss.1']
    %6 = vsyncpa [#allocation3], 0
    %s7 = scalar_lea.sflag [#allocation3], 1
    %8 = vsyncpa %s7, 0
    loop: start=0, step=1, limit=6
    $region2: #{total_variation_loss.1} parent=1 // loop_pre_header
      _
    $region3: #{total_variation_loss.1} parent=1 // loop_header
      %s10 = sphi 0, %s14
      %p11 = scmp.ge.s32.totalorder %s10, 6
      %s20 = sphi 0, %s22
      %s23 = sphi 0, %s20
      %s24 = sphi 0, %s23
      %s40 = sphi 0, %s24
      %s46 = sphi 0, %s48
      %s49 = sphi 0, %s46
      %s50 = sphi 0, %s49
      %s66 = sphi 0, %s50
    $region4: #{total_variation_loss.1} parent=1 // loop_header_branch
      %13 = sbr.rel (%p11) target = $region8
    $region5: #{total_variation_loss.1} parent=1 // loop_body
      %s15 = ssub.s32 %s10, 1
      %s16 = ssub.s32 %s10, 2
      %s17 = sadd.s32 %s10, 1
      %s18 = ssub.s32 %s10, %s17
      %p19 = scmp.eq.s32.totalorder %s18, 0
      %s21 = sadd.s32 %s20, 1
      %s22 = scalar_select %p19, %s20, %s21
      %p25 = pneg %p19
      %p26 = scmp.eq.s32.totalorder %s10, 3
      %p27 = por %p25, %p26
      %p28 = scmp.ne.s32.totalorder %s20, %s23
      %p29 = scmp.eq.s32.totalorder %s10, 0
      %p30 = por %p28, %p29
      %p31 = scmp.ne.s32.totalorder %s20, %s23
      %p32 = scmp.eq.s32.totalorder %s15, 3
      %p33 = por %p31, %p32
      %p34 = scmp.ne.s32.totalorder %s23, %s24
      %p35 = scmp.eq.s32.totalorder %s15, 0
      %p36 = por %p34, %p35
      %p37 = scmp.ne.s32.totalorder %s23, %s24
      %p38 = scmp.eq.s32.totalorder %s16, 3
      %p39 = por %p37, %p38
      %p41 = scmp.ne.s32.totalorder %s24, %s40
      %p42 = scmp.eq.s32.totalorder %s16, 0
      %p43 = por %p41, %p42
      %s44 = ssub.s32 %s10, %s17
      %p45 = scmp.eq.s32.totalorder %s44, 0
      %s47 = sadd.s32 %s46, 1
      %s48 = scalar_select %p45, %s46, %s47
      %p51 = pneg %p45
      %p52 = scmp.eq.s32.totalorder %s10, 3
      %p53 = por %p51, %p52
      %p54 = scmp.ne.s32.totalorder %s46, %s49
      %p55 = scmp.eq.s32.totalorder %s10, 0
      %p56 = por %p54, %p55
      %p57 = scmp.ne.s32.totalorder %s46, %s49
      %p58 = scmp.eq.s32.totalorder %s15, 3
      %p59 = por %p57, %p58
      %p60 = scmp.ne.s32.totalorder %s49, %s50
      %p61 = scmp.eq.s32.totalorder %s15, 0
      %p62 = por %p60, %p61
      %p63 = scmp.ne.s32.totalorder %s49, %s50
      %p64 = scmp.eq.s32.totalorder %s16, 3
      %p65 = por %p63, %p64
      %p67 = scmp.ne.s32.totalorder %s50, %s66
      %p68 = scmp.eq.s32.totalorder %s16, 0
      %p69 = por %p67, %p68
      %p70 = scmp.le.s32.totalorder 1, %s10
      %p71 = scmp.lt.s32.totalorder %s10, 5
      %p72 = pnand %p70, %p71
      %p73 = pneg %p72
      // Predicated region
      $region9: #{total_variation_loss.1} parent=5 // pred_check
        _
      $region10: #{total_variation_loss.1} parent=5 // pred_check_branch
        %75 = sbr.rel (%p72) target = $region12
      $region11: #{total_variation_loss.1} parent=5 // pred_region
        %s76 = ssub.s32 %s10, 1
      $region12: #{total_variation_loss.1} parent=5 // pred_fallthru
        _
      %p77 = scmp.lt.s32.totalorder %s10, 4
      // Predicated region
      $region13: #{total_variation_loss.1} parent=5 // pred_check
        %p78 = pneg %p77
      $region14: #{total_variation_loss.1} parent=5 // pred_check_branch
        %80 = sbr.rel (%p78) target = $region16
      $region15: #{total_variation_loss.1} parent=5 // pred_region
        // Predicated region
        $region17: #{total_variation_loss.1} parent=15 // pred_check
          %p81 = pneg %p30
        $region18: #{total_variation_loss.1} parent=15 // pred_check_branch
          %83 = sbr.rel (%p81) target = $region20
        $region19: #{total_variation_loss.1} parent=15 // pred_region
          %s84 = sand.u32 %s20, 1
          %s85 = scalar_lea.sflag [#allocation3], %s84
          %s86 = sand.u32 %s20, 1
          %s87 = smul.addr %s86, 32
          %s88 = scalar_lea.vmem [#allocation2], %s87
          %s89 = smul.u32 2, %s10
          %91 = vsyncadd %s85, 0
          %s92 = smul.addr %s89, 2
          %s93 = smul.addr %s92, 8
          %s94 = scalar_lea.hbm %s0, %s93
          %s95 = sshll.u32 %s94, 4
          %s96 = int_to_ptr.hbm [resolvable:$true] %s95
          %s97 = sshll.u32 %s88, 4
          %s98 = int_to_ptr.vmem [resolvable:$true] %s97
          %103 = dma.hbm_to_vmem [thread:$0]  %s96, 512, %s98, %s85, 128, 128, 8
        $region20: #{total_variation_loss.1} parent=15 // pred_fallthru
          _
      $region16: #{total_variation_loss.1} parent=5 // pred_fallthru
        _
      %p104 = scmp.le.s32.totalorder 1, %s10
      %p105 = scmp.lt.s32.totalorder %s10, 5
      %p106 = pnand %p104, %p105
      %p107 = pneg %p106
      // Predicated region
      $region21: #{total_variation_loss.1} parent=5 // pred_check
        _
      $region22: #{total_variation_loss.1} parent=5 // pred_check_branch
        %109 = sbr.rel (%p106) target = $region24
      $region23: #{total_variation_loss.1} parent=5 // pred_region
        %s110 = ssub.s32 %s10, 1
        %s111 = sand.u32 %s23, 1
        %s112 = scalar_lea.sflag [#allocation3], %s111
        %s113 = sand.u32 %s23, 1
        %s114 = smul.addr %s113, 32
        %s115 = scalar_lea.vmem [#allocation2], %s114
        // Predicated region
        $region25: #{total_variation_loss.1} parent=23 // pred_check
          %p116 = pneg %p36
        $region26: #{total_variation_loss.1} parent=23 // pred_check_branch
          %118 = sbr.rel (%p116) target = $region28
        $region27: #{total_variation_loss.1} parent=23 // pred_region
          %120 = dma.done %s112, 512
        $region28: #{total_variation_loss.1} parent=23 // pred_fallthru
          _
        %s121 = sand.u32 %s23, 1
        %s122 = scalar_lea.sflag [#allocation3], %s121
        %s123 = sand.u32 %s23, 1
        %s124 = smul.addr %s123, 32
        %s125 = scalar_lea.vmem [#allocation2], %s124
        %p126 = pneg %p36
        %p127 = pneg %p33
        %p128 = pneg %p62
        %p129 = pneg %p59
        %p130 = scmp.lt.s32.totalorder %s15, 3
        %s131 = scalar_select %p130, %s15, 3
        %s132 = smul.addr %s131, 2
        %s133 = scalar_lea.vmem %s1, %s132
        %s134 = smul.u32 2, %s15
        %p135 = scmp.lt.s32.totalorder %s15, 3
        %s136 = scalar_select %p135, %s15, 3
        %s137 = smul.addr %s136, 2
        %s138 = scalar_lea.vmem %s1, %s137
        %v139 = vld [vmem:[%s115] sm:$0xff]
        %v140 = vld [vmem:[%s115 + $0x8] sm:$0xff]
        %v141 = vld [vmem:[%s115 + $0x10] sm:$0xff]
        %v142 = vld [vmem:[%s115 + $0x18] sm:$0xff]
        %vm147 = vcmask 1040384
        %v148 = vrot.slane %v139, 7
        %v149 = vrot.slane %v140, 7
        %v150 = vsel %vm147, %v148, %v149
        %v151 = vrot.slane %v141, 7
        %v152 = vrot.slane %v142, 7
        %v153 = vsel %vm147, %v151, %v152
        %v158 = vsub.f32 %v139, %v148
        %v159 = vsub.f32 %v140, %v150
        %v160 = vsub.f32 %v141, %v151
        %v161 = vsub.f32 %v142, %v153
        %v162 = vand.u32 2147483647, %v158
        %v163 = vand.u32 2147483647, %v159
        %v164 = vand.u32 2147483647, %v160
        %v165 = vand.u32 2147483647, %v161
        %vm170 = vcmask 1046528
        %v171 = vrot.slane %v162, 1
        %v172 = vrot.slane %v163, 1
        %v173 = vsel %vm170, %v171, %v172
        %v174 = vrot.slane %v164, 1
        %v175 = vrot.slane %v165, 1
        %v176 = vsel %vm170, %v174, %v175
        %vm181 = vcmask 130048
        %v182 = vsel %vm181, %v173, 0.0
        %vm183 = vcmask 129024
        %v184 = vsel %vm183, %v172, 0.0
        %v185 = vadd.f32 %v182, %v184
        %v186 = vsel %vm181, %v176, 0.0
        %v187 = vadd.f32 %v185, %v186
        %v188 = vsel %vm183, %v175, 0.0
        %v189 = vadd.f32 %v187, %v188
        %190 = vadd.xlane.f32.xlu0 %v189
        %v191 = vpop.xlane.xlu0 %190
        %v192 = vrot.slane %v191, 4
        %v193 = vadd.f32 %v191, %v192
        %v194 = vrot.slane %v193, 2
        %v195 = vadd.f32 %v193, %v194
        %v196 = vrot.slane %v195, 1
        %v197 = vadd.f32 %v195, %v196
        %s198 = vtos %v197
        %199 = vrot.lane.b32.xlu0 %v139, 1
        %v200 = vpop.permute.xlu0 %199
        %201 = vrot.lane.b32.xlu0 %v140, 1
        %v202 = vpop.permute.xlu0 %201
        %203 = vrot.lane.b32.xlu0 %v141, 1
        %v204 = vpop.permute.xlu0 %203
        %205 = vrot.lane.b32.xlu0 %v142, 1
        %v206 = vpop.permute.xlu0 %205
        %v211 = vsub.f32 %v139, %v200
        %v212 = vsub.f32 %v140, %v202
        %v213 = vsub.f32 %v141, %v204
        %v214 = vsub.f32 %v142, %v206
        %v215 = vand.u32 2147483647, %v211
        %v216 = vand.u32 2147483647, %v212
        %v217 = vand.u32 2147483647, %v213
        %v218 = vand.u32 2147483647, %v214
        %223 = vrot.lane.b32.xlu0 %v215, 127
        %v224 = vpop.permute.xlu0 %223
        %225 = vrot.lane.b32.xlu0 %v216, 127
        %v226 = vpop.permute.xlu0 %225
        %227 = vrot.lane.b32.xlu0 %v217, 127
        %v228 = vpop.permute.xlu0 %227
        %229 = vrot.lane.b32.xlu0 %v218, 127
        %v230 = vpop.permute.xlu0 %229
        %vm235 = vcmask 121856
        %v236 = vsel %vm235, %v224, 0.0
        %v237 = vsel %vm235, %v226, 0.0
        %v238 = vadd.f32 %v236, %v237
        %v239 = vsel %vm235, %v228, 0.0
        %v240 = vadd.f32 %v238, %v239
        %v241 = vsel %vm235, %v230, 0.0
        %v242 = vadd.f32 %v240, %v241
        %243 = vadd.xlane.f32.xlu0 %v242
        %v244 = vpop.xlane.xlu0 %243
        %v245 = vrot.slane %v244, 4
        %v246 = vadd.f32 %v244, %v245
        %v247 = vrot.slane %v246, 2
        %v248 = vadd.f32 %v246, %v247
        %v249 = vrot.slane %v248, 1
        %v250 = vadd.f32 %v248, %v249
        %s251 = vtos %v250
        %v252 = vstv %s198
        %v253 = vstv %s251
        %v254 = vsel %vm147, %v252, %v253
        %255 = vst [vmem:[%s138] sm:$0x3] %v254
        %p256 = scmp.lt.s32.totalorder %s15, 3
        %s257 = scalar_select %p256, %s15, 3
        %s258 = smul.addr %s257, 2
        %s259 = scalar_lea.vmem %s1, %s258
        // Predicated region
        $region29: #{total_variation_loss.1} parent=23 // pred_check
          %p260 = pneg %p59
        $region30: #{total_variation_loss.1} parent=23 // pred_check_branch
          %262 = sbr.rel (%p260) target = $region32
        $region31: #{total_variation_loss.1} parent=23 // pred_region
          _
        $region32: #{total_variation_loss.1} parent=23 // pred_fallthru
          _
      $region24: #{total_variation_loss.1} parent=5 // pred_fallthru
        _
      %p263 = scmp.le.s32.totalorder 2, %s10
      // Predicated region
      $region33: #{total_variation_loss.1} parent=5 // pred_check
        %p264 = pneg %p263
      $region34: #{total_variation_loss.1} parent=5 // pred_check_branch
        %266 = sbr.rel (%p264) target = $region36
      $region35: #{total_variation_loss.1} parent=5 // pred_region
        %s267 = ssub.s32 %s10, 2
        // Predicated region
        $region37: #{total_variation_loss.1} parent=35 // pred_check
          %p268 = pneg %p65
        $region38: #{total_variation_loss.1} parent=35 // pred_check_branch
          %270 = sbr.rel (%p268) target = $region40
        $region39: #{total_variation_loss.1} parent=35 // pred_region
          %p271 = scmp.lt.s32.totalorder %s16, 3
          %s272 = scalar_select %p271, %s16, 3
          %s273 = smul.addr %s272, 2
          %s274 = scalar_lea.vmem %s1, %s273
        $region40: #{total_variation_loss.1} parent=35 // pred_fallthru
          _
      $region36: #{total_variation_loss.1} parent=5 // pred_fallthru
        _
    $region6: #{total_variation_loss.1} parent=1 // loop_footer
      %s14 = sadd.s32 1, %s10
    $region7: #{total_variation_loss.1} parent=1 // loop_footer_branch
      %9 = sbr.rel target = $region3
    $region8: #{total_variation_loss.1} parent=1 // loop_exit
      _
    %275 = vsyncpa [#allocation3], 1
    %s276 = scalar_lea.sflag [#allocation3], 1
    %277 = vsyncpa %s276, 1

</llo_original>
